<compile_context>
chip_gen: v7x
topology: tpu7x:2x2x1
jax: 0.10.0
libtpu: 0.0.40
codegen_flags: <defaults>
</compile_context>

<pallas_src>
import functools

import jax
import jax.numpy as jnp
from jax.experimental import pallas as pl
from jax.experimental.pallas import tpu as pltpu

LANES = 128
MAX_BLOCK_ROWS = 1024   # (1024,128) f32 = 512 KiB per input block (sweep plateau)
SLAB_ROWS = 256         # in-kernel strip-mine granularity
ROW_ALIGN = 32          # keeps int8/bf16/f32 sublane tiling happy

_ARBITRARY = getattr(pltpu, "ARBITRARY", "arbitrary")
_CORE_PARALLEL = getattr(pltpu, "CORE_PARALLEL", "parallel")


def _round_up(x, m):
    return (x + m - 1) // m * m


@functools.lru_cache(maxsize=None)
def _num_tensorcores():
    """TensorCores per chip: 1 on v5e/v6e, 2 on v7x.  Defensive; defaults to 1."""
    try:
        info = pltpu.get_tpu_info()
        for name in ("tensorcores_per_chip", "num_tensorcores",
                     "cores_per_chip", "num_cores", "core_count"):
            v = getattr(info, name, None)
            if isinstance(v, int) and 1 <= v <= 8:
                return v
    except Exception:
        pass
    try:
        kind = jax.devices()[0].device_kind.lower()
        if "v7" in kind or "7x" in kind:
            return 2
    except Exception:
        pass
    return 1


def _focal_loss_kernel(pred_ref, tgt_ref, loss_out_ref, pos_out_ref, *,
                       alpha, gamma, rows, block_rows, slab_rows,
                       blocks_per_split, num_splits):
    if num_splits > 1:
        c = pl.program_id(0)          # core-parallel split (v7x)
        j = pl.program_id(1)          # "arbitrary" accumulation axis
        blk = c * blocks_per_split + j  # un-clamped linear block id
    else:
        j = pl.program_id(0)
        blk = j

    @pl.when(j == 0)
    def _():
        loss_out_ref[...] = jnp.zeros_like(loss_out_ref)
        pos_out_ref[...] = jnp.zeros_like(pos_out_ref)

    num_slabs = block_rows // slab_rows
    # Built once per grid step and reused by every slab (JAX does not CSE
    # broadcast_in_dim, so keep it out of the loop).
    slab_iota = jax.lax.broadcasted_iota(jnp.int32, (slab_rows, LANES), 0)
    block_row0 = blk * block_rows

    def slab_body(s, carry):
        loss_acc, pos_acc = carry
        r0 = pl.multiple_of(s * slab_rows, slab_rows)
        x = pred_ref[pl.ds(r0, slab_rows), :].astype(jnp.float32)      # logits
        label = tgt_ref[pl.ds(r0, slab_rows), :].astype(jnp.float32)

        # Valid = real rows (kills Pallas partial-block padding and clamped
        # phantom steps) AND not the ignore label (-1, also used for the
        # wrapper's lane-tail / row padding).  Per slab this is just a scalar
        # compare against the hoisted iota plus one AND.
        rows_left = rows - (block_row0 + s * slab_rows)
        valid = (slab_iota < rows_left) & (label != -1.0)

        # Numerically stable sigmoid + both BCE log terms from the logits,
        # sharing e = exp(-|x|): exp + log1p + approx-vrcp = 3 EUP ops/elem.
        e = jnp.exp(-jnp.abs(x))
        log1pe = jnp.log1p(e)
        inv = pl.reciprocal(1.0 + e, approx=True)
        p = jnp.where(x >= 0.0, inv, e * inv)                          # sigmoid(x)
        # PyTorch BCELoss clamps each log term at -100.
        log_p = jnp.maximum(jnp.minimum(x, 0.0) - log1pe, -100.0)      # log(p)
        log_1mp = jnp.maximum(-jnp.maximum(x, 0.0) - log1pe, -100.0)   # log(1-p)

        is_pos = label > 0.0
        if gamma == 2.0:              # default: plain multiplies, no pow() on EUP
            d = label - p
            fw_pos = d * d
            fw_neg = p * p
        else:
            fw_pos = jnp.abs(label - p) ** gamma
            fw_neg = p ** gamma       # p > 0, abs not needed
        focal_weight = jnp.where(is_pos, alpha * fw_pos, (1.0 - alpha) * fw_neg)

        bce = -(label * log_p + (1.0 - label) * log_1mp)
        loss = jnp.where(valid, bce * focal_weight, 0.0)
        pos = jnp.where(valid & is_pos, 1.0, 0.0)

        # Fold (slab_rows,128) -> (8,128) with pure VPU adds (tile-aligned).
        loss_acc = loss_acc + loss.reshape(-1, 8, LANES).sum(axis=0)
        pos_acc = pos_acc + pos.reshape(-1, 8, LANES).sum(axis=0)
        return loss_acc, pos_acc

    zeros = jnp.zeros((8, LANES), jnp.float32)
    loss_acc, pos_acc = jax.lax.fori_loop(
        0, num_slabs, slab_body, (zeros, zeros), unroll=True)

    loss_out_ref[...] += loss_acc
    pos_out_ref[...] += pos_acc


@functools.partial(jax.jit, static_argnames=("alpha", "gamma", "num_splits"))
def _focal_loss_impl(pred, target, alpha, gamma, num_splits):
    pred_flat = jnp.ravel(pred)
    tgt_flat = jnp.ravel(target)
    n = pred_flat.shape[0]

    # Lane-tail pad (< 128 elems) only if n is not a multiple of 128;
    # padded labels are -1 -> masked out in-kernel.
    rows = pl.cdiv(n, LANES)
    tail = rows * LANES - n
    if tail:
        pred_flat = jnp.pad(pred_flat, (0, tail))
        tgt_flat = jnp.pad(tgt_flat, (0, tail), constant_values=-1)
    pred2d = pred_flat.reshape(rows, LANES)
    tgt2d = tgt_flat.reshape(rows, LANES)

    # Block size: <= 1024 rows, a multiple of 32 rows (packed-dtype tiling),
    # and a multiple of the 256-row slab when strip-mined.
    block_rows = min(MAX_BLOCK_ROWS, _round_up(rows, ROW_ALIGN))
    if block_rows > SLAB_ROWS:
        block_rows = _round_up(block_rows, SLAB_ROWS)
    slab_rows = min(block_rows, SLAB_ROWS)
    if rows < block_rows:             # tiny inputs: a few ignore-label rows
        extra = block_rows - rows
        pred2d = jnp.pad(pred2d, ((0, extra), (0, 0)))
        tgt2d = jnp.pad(tgt2d, ((0, extra), (0, 0)), constant_values=-1)

    nb = pl.cdiv(pred2d.shape[0], block_rows)      # real blocks

    if num_splits > 1:                # v7x: split across TensorCores
        bps = pl.cdiv(nb, num_splits)
        grid = (num_splits, bps)
        # Clamp phantom steps onto the last real block; their contribution is
        # masked out in-kernel via the row-index check.
        in_map = lambda c, j: (jnp.minimum(c * bps + j, nb - 1), 0)
        out_map = lambda c, j: (c, 0)
        out_rows = num_splits * 8
        dim_sem = (_CORE_PARALLEL, _ARBITRARY)
    else:                             # v5e / v6e: single core, no phantom steps
        bps = nb
        grid = (nb,)
        in_map = lambda j: (j, 0)
        out_map = lambda j: (0, 0)
        out_rows = 8
        dim_sem = (_ARBITRARY,)

    kernel = functools.partial(
        _focal_loss_kernel, alpha=alpha, gamma=gamma, rows=rows,
        block_rows=block_rows, slab_rows=slab_rows,
        blocks_per_split=bps, num_splits=num_splits)

    loss_part, pos_part = pl.pallas_call(
        kernel,
        out_shape=(
            jax.ShapeDtypeStruct((out_rows, LANES), jnp.float32),
            jax.ShapeDtypeStruct((out_rows, LANES), jnp.float32),
        ),
        grid_spec=pltpu.PrefetchScalarGridSpec(
            num_scalar_prefetch=0,
            grid=grid,
            in_specs=[
                pl.BlockSpec((block_rows, LANES), in_map),
                pl.BlockSpec((block_rows, LANES), in_map),
            ],
            out_specs=[
                pl.BlockSpec((8, LANES), out_map),
                pl.BlockSpec((8, LANES), out_map),
            ],
        ),
        compiler_params=pltpu.CompilerParams(dimension_semantics=dim_sem),
    )(pred2d, tgt2d)

    loss_sum = jnp.sum(loss_part)
    pos_num = jnp.maximum(jnp.sum(pos_part), 1.0)
    return loss_sum / pos_num


def focal_loss(pred, target, alpha=0.25, gamma=2.0):
    """Sigmoid focal loss; returns a scalar, matching FocalLoss.forward."""
    return _focal_loss_impl(pred, target, float(alpha), float(gamma),
                            _num_tensorcores())


def _reference(pred, target, alpha=0.25, gamma=2.0):
    p = jax.nn.sigmoid(jnp.ravel(pred).astype(jnp.float32))
    label = jnp.ravel(target).astype(jnp.float32)
    pos_num = jnp.maximum(jnp.sum(label > 0).astype(jnp.float32), 1.0)
    valid = (label != -1.0).astype(jnp.float32)
    fw = (alpha * jnp.abs(label - p) ** gamma * (label > 0)
          + (1.0 - alpha) * jnp.abs(p) ** gamma * (label <= 0))
    bce = -(label * jnp.maximum(jnp.log(p), -100.0)
            + (1.0 - label) * jnp.maximum(jnp.log(1.0 - p), -100.0))
    return jnp.sum(bce * fw * valid) / pos_num


if __name__ == "__main__":
    key = jax.random.PRNGKey(0)

    # (shape, pred_dtype, target_dtype)
    cases = [
        ((2, 4, 16, 16), jnp.float32, jnp.float32),   # primary small (B,C,H,W)
        ((3, 5, 7, 11), jnp.float32, jnp.float32),    # ragged: lane-tail / row pad
        ((4100, 128), jnp.float32, jnp.float32),      # multi-block: partial last
                                                      # block, phantom clamping,
                                                      # j-accumulation
        ((31, 17, 9), jnp.bfloat16, jnp.bfloat16),    # narrow-dtype passthrough
    ]
    for si, (shape, pdt, tdt) in enumerate(cases):
        k1, k2 = jax.random.split(jax.random.fold_in(key, si))
        pred = jax.random.normal(k1, shape, dtype=jnp.float32).astype(pdt)  # logits
        target = jax.random.randint(k2, shape, minval=-1, maxval=2          # {-1,0,1}
                                    ).astype(tdt)
        out = focal_loss(pred, target)
        jax.block_until_ready(out)
        ref = _reference(pred, target)
        # rtol loosened to 2e-3 for the approx-vrcp sigmoid (~2^-12 rel error).
        assert jnp.allclose(out, ref, rtol=2e-3, atol=1e-6), (shape, out, ref)

    print("KERNEL_OK")
</pallas_src>

<mosaic_0001>
module attributes {stable_mosaic.version = 11 : i64} {
  func.func @_focal_loss_kernel(%arg0: i32, %arg1: memref<32x128xf32, #tpu.memory_space<vmem>>, %arg2: memref<32x128xf32, #tpu.memory_space<vmem>>, %arg3: memref<8x128xf32, #tpu.memory_space<vmem>>, %arg4: memref<8x128xf32, #tpu.memory_space<vmem>>) attributes {dimension_semantics = [#tpu.dimension_semantics<arbitrary>], iteration_bounds = array<i64: 1>, scalar_prefetch = 0 : i64, scratch_operands = 0 : i64, tpu.core_type = #tpu.core_type<tc>, window_params = [{transform_indices = @transform_0, window_bounds = array<i64: 32, 128>}, {transform_indices = @transform_1, window_bounds = array<i64: 32, 128>}, {pipeline_mode = #tpu.pipeline_mode<synchronous>, transform_indices = @transform_2, window_bounds = array<i64: 8, 128>}, {pipeline_mode = #tpu.pipeline_mode<synchronous>, transform_indices = @transform_3, window_bounds = array<i64: 8, 128>}]} {
    %c0_i32 = arith.constant 0 : i32
    %0 = arith.cmpi eq, %arg0, %c0_i32 : i32
    %1 = arith.extui %0 : i1 to i32
    %c0_i32_0 = arith.constant 0 : i32
    %2 = arith.cmpi ne, %1, %c0_i32_0 : i32
    scf.if %2 {
      %cst_32 = arith.constant 0.000000e+00 : f32
      %80 = vector.broadcast %cst_32 : f32 to vector<8x128xf32>
      %c0_33 = arith.constant 0 : index
      %c0_34 = arith.constant 0 : index
      %81 = vector.load %arg3[%c0_33, %c0_34] : memref<8x128xf32, #tpu.memory_space<vmem>>, vector<8x128xf32>
      tpu.vector_store %arg3[%c0_33, %c0_34], %80 {strides = array<i32>} : memref<8x128xf32, #tpu.memory_space<vmem>>, vector<8x128xf32>,
      %cst_35 = arith.constant 0.000000e+00 : f32
      %82 = vector.broadcast %cst_35 : f32 to vector<8x128xf32>
      %c0_36 = arith.constant 0 : index
      %c0_37 = arith.constant 0 : index
      %83 = vector.load %arg4[%c0_36, %c0_37] : memref<8x128xf32, #tpu.memory_space<vmem>>, vector<8x128xf32>
      tpu.vector_store %arg4[%c0_36, %c0_37], %82 {strides = array<i32>} : memref<8x128xf32, #tpu.memory_space<vmem>>, vector<8x128xf32>,
    } else {
    }
    %3 = tpu.iota {dimensions = array<i32: 0>} : vector<32x128xi32>
    %c32_i32 = arith.constant 32 : i32
    %4 = arith.muli %arg0, %c32_i32 : i32
    %cst = arith.constant 0.000000e+00 : f32
    %5 = vector.broadcast %cst : f32 to vector<8x128xf32>
    %c0_i32_1 = arith.constant 0 : i32
    %c32_i32_2 = arith.constant 32 : i32
    %6 = arith.muli %c0_i32_1, %c32_i32_2 : i32
    %7 = tpu.assume_multiple %6, 32 : i32
    %8 = arith.index_cast %7 : i32 to index
    %c0 = arith.constant 0 : index
    %9 = vector.load %arg1[%8, %c0] : memref<32x128xf32, #tpu.memory_space<vmem>>, vector<32x128xf32>
    %10 = arith.index_cast %7 : i32 to index
    %c0_3 = arith.constant 0 : index
    %11 = vector.load %arg2[%10, %c0_3] : memref<32x128xf32, #tpu.memory_space<vmem>>, vector<32x128xf32>
    %c32_i32_4 = arith.constant 32 : i32
    %12 = arith.muli %c0_i32_1, %c32_i32_4 : i32
    %13 = arith.addi %4, %12 : i32
    %c16_i32 = arith.constant 16 : i32
    %14 = arith.subi %c16_i32, %13 : i32
    %15 = vector.broadcast %14 : i32 to vector<32x128xi32>
    %16 = arith.cmpi slt, %3, %15 : vector<32x128xi32>
    %cst_5 = arith.constant -1.000000e+00 : f32
    %17 = vector.broadcast %cst_5 : f32 to vector<32x128xf32>
    %18 = arith.cmpf one, %11, %17 : vector<32x128xf32>
    %19 = arith.andi %16, %18 : vector<32x128xi1>
    %20 = math.absf %9 : vector<32x128xf32>
    %cst_6 = arith.constant 0.000000e+00 : f32
    %21 = vector.broadcast %cst_6 : f32 to vector<32x128xf32>
    %22 = arith.subf %21, %20 : vector<32x128xf32>
    %23 = math.exp %22 : vector<32x128xf32>
    %24 = math.log1p %23 : vector<32x128xf32>
    %cst_7 = arith.constant 1.000000e+00 : f32
    %25 = vector.broadcast %cst_7 : f32 to vector<32x128xf32>
    %26 = arith.addf %25, %23 : vector<32x128xf32>
    %27 = tpu.reciprocal %26 {approx = true} : vector<32x128xf32> -> vector<32x128xf32>
    %cst_8 = arith.constant 0.000000e+00 : f32
    %28 = vector.broadcast %cst_8 : f32 to vector<32x128xf32>
    %29 = arith.cmpf oge, %9, %28 : vector<32x128xf32>
    %30 = arith.mulf %23, %27 : vector<32x128xf32>
    %31 = arith.select %29, %27, %30 : vector<32x128xi1>, vector<32x128xf32>
    %cst_9 = arith.constant 0.000000e+00 : f32
    %32 = vector.broadcast %cst_9 : f32 to vector<32x128xf32>
    %33 = arith.minimumf %9, %32 : vector<32x128xf32>
    %34 = arith.subf %33, %24 : vector<32x128xf32>
    %cst_10 = arith.constant -1.000000e+02 : f32
    %35 = vector.broadcast %cst_10 : f32 to vector<32x128xf32>
    %36 = arith.maximumf %34, %35 : vector<32x128xf32>
    %cst_11 = arith.constant 0.000000e+00 : f32
    %37 = vector.broadcast %cst_11 : f32 to vector<32x128xf32>
    %38 = arith.maximumf %9, %37 : vector<32x128xf32>
    %cst_12 = arith.constant 0.000000e+00 : f32
    %39 = vector.broadcast %cst_12 : f32 to vector<32x128xf32>
    %40 = arith.subf %39, %38 : vector<32x128xf32>
    %41 = arith.subf %40, %24 : vector<32x128xf32>
    %cst_13 = arith.constant -1.000000e+02 : f32
    %42 = vector.broadcast %cst_13 : f32 to vector<32x128xf32>
    %43 = arith.maximumf %41, %42 : vector<32x128xf32>
    %cst_14 = arith.constant 0.000000e+00 : f32
    %44 = vector.broadcast %cst_14 : f32 to vector<32x128xf32>
    %45 = arith.cmpf ogt, %11, %44 : vector<32x128xf32>
    %46 = arith.subf %11, %31 : vector<32x128xf32>
    %47 = arith.mulf %46, %46 : vector<32x128xf32>
    %48 = arith.mulf %31, %31 : vector<32x128xf32>
    %cst_15 = arith.constant 2.500000e-01 : f32
    %49 = vector.broadcast %cst_15 : f32 to vector<32x128xf32>
    %50 = arith.mulf %49, %47 : vector<32x128xf32>
    %cst_16 = arith.constant 7.500000e-01 : f32
    %51 = vector.broadcast %cst_16 : f32 to vector<32x128xf32>
    %52 = arith.mulf %51, %48 : vector<32x128xf32>
    %53 = arith.select %45, %50, %52 : vector<32x128xi1>, vector<32x128xf32>
    %54 = arith.mulf %11, %36 : vector<32x128xf32>
    %cst_17 = arith.constant 1.000000e+00 : f32
    %55 = vector.broadcast %cst_17 : f32 to vector<32x128xf32>
    %56 = arith.subf %55, %11 : vector<32x128xf32>
    %57 = arith.mulf %56, %43 : vector<32x128xf32>
    %58 = arith.addf %54, %57 : vector<32x128xf32>
    %cst_18 = arith.constant 0.000000e+00 : f32
    %59 = vector.broadcast %cst_18 : f32 to vector<32x128xf32>
    %60 = arith.subf %59, %58 : vector<32x128xf32>
    %61 = arith.mulf %60, %53 : vector<32x128xf32>
    %cst_19 = arith.constant 0.000000e+00 : f32
    %62 = vector.broadcast %cst_19 : f32 to vector<32x128xf32>
    %63 = arith.select %19, %61, %62 : vector<32x128xi1>, vector<32x128xf32>
    %64 = arith.andi %19, %45 : vector<32x128xi1>
    %cst_20 = arith.constant 1.000000e+00 : f32
    %cst_21 = arith.constant 0.000000e+00 : f32
    %65 = vector.broadcast %cst_20 : f32 to vector<32x128xf32>
    %66 = vector.broadcast %cst_21 : f32 to vector<32x128xf32>
    %67 = arith.select %64, %65, %66 : vector<32x128xi1>, vector<32x128xf32>
    %68 = vector.shape_cast %63 : vector<32x128xf32> to vector<4x8x128xf32>
    %cst_22 = arith.constant dense<0.000000e+00> : vector<8x128xf32>
    %69 = vector.multi_reduction <add>, %68, %cst_22 [0] : vector<4x8x128xf32> to vector<8x128xf32>
    %70 = arith.addf %5, %69 : vector<8x128xf32>
    %71 = vector.shape_cast %67 : vector<32x128xf32> to vector<4x8x128xf32>
    %cst_23 = arith.constant dense<0.000000e+00> : vector<8x128xf32>
    %72 = vector.multi_reduction <add>, %71, %cst_23 [0] : vector<4x8x128xf32> to vector<8x128xf32>
    %73 = arith.addf %5, %72 : vector<8x128xf32>
    %c1_i32 = arith.constant 1 : i32
    %c0_24 = arith.constant 0 : index
    %c0_25 = arith.constant 0 : index
    %74 = vector.load %arg3[%c0_24, %c0_25] : memref<8x128xf32, #tpu.memory_space<vmem>>, vector<8x128xf32>
    %75 = arith.addf %74, %70 : vector<8x128xf32>
    %c0_26 = arith.constant 0 : index
    %c0_27 = arith.constant 0 : index
    %76 = vector.load %arg3[%c0_26, %c0_27] : memref<8x128xf32, #tpu.memory_space<vmem>>, vector<8x128xf32>
    tpu.vector_store %arg3[%c0_26, %c0_27], %75 {strides = array<i32>} : memref<8x128xf32, #tpu.memory_space<vmem>>, vector<8x128xf32>,
    %c0_28 = arith.constant 0 : index
    %c0_29 = arith.constant 0 : index
    %77 = vector.load %arg4[%c0_28, %c0_29] : memref<8x128xf32, #tpu.memory_space<vmem>>, vector<8x128xf32>
    %78 = arith.addf %77, %73 : vector<8x128xf32>
    %c0_30 = arith.constant 0 : index
    %c0_31 = arith.constant 0 : index
    %79 = vector.load %arg4[%c0_30, %c0_31] : memref<8x128xf32, #tpu.memory_space<vmem>>, vector<8x128xf32>
    tpu.vector_store %arg4[%c0_30, %c0_31], %78 {strides = array<i32>} : memref<8x128xf32, #tpu.memory_space<vmem>>, vector<8x128xf32>,
    return
  }
  func.func @transform_0(%arg0: i32) -> (i32, i32) {
    %c0_i32 = arith.constant 0 : i32
    %c0_i32_0 = arith.constant 0 : i32
    return %arg0, %c0_i32 : i32, i32
  }
  func.func @transform_1(%arg0: i32) -> (i32, i32) {
    %c0_i32 = arith.constant 0 : i32
    %c0_i32_0 = arith.constant 0 : i32
    return %arg0, %c0_i32 : i32, i32
  }
  func.func @transform_2(%arg0: i32) -> (i32, i32) {
    %c0_i32 = arith.constant 0 : i32
    %c0_i32_0 = arith.constant 0 : i32
    %c0_i32_1 = arith.constant 0 : i32
    return %c0_i32, %c0_i32_0 : i32, i32
  }
  func.func @transform_3(%arg0: i32) -> (i32, i32) {
    %c0_i32 = arith.constant 0 : i32
    %c0_i32_0 = arith.constant 0 : i32
    %c0_i32_1 = arith.constant 0 : i32
    return %c0_i32, %c0_i32_0 : i32, i32
  }
}

</mosaic_0001>

<llo_original>
// kernel: _focal_loss_impl.1
$region0: #{_focal_loss_impl.1}
  #allocation0 [shape = 'u32[]', space=smem, size = 0x4, offset = 0x4, fixed_abs, tag = 'smem constant byte address 0x4 - core index']
  #allocation1 [shape = 'u32[144,128]{1,0:T(1,128)}', space=vmem, size = 0x12000, scoped, tag = 'internal scratch']
  %s0 = inlined_call_operand.vmem [shape: f32[32,128], index: 0, kind: input, shape index: {}]
  %s1 = inlined_call_operand.vmem [shape: f32[32,128], index: 1, kind: input, shape index: {}]
  %s2 = inlined_call_operand.vmem [shape: f32[8,128], index: 2, kind: output, shape index: {0}]
  %s3 = inlined_call_operand.vmem [shape: f32[8,128], index: 3, kind: output, shape index: {1}]
  %4 = xla_tuple %s2, %s3
  %s5 = sld [smem:[#allocation0]]
  $region30: #{_focal_loss_impl.1} parent=0
    _
  %s7 = ssub.s32 1, %s5
  %s8 = scalar_select 0, %s7, %s5
  // Predicated region
  $region2: #{_focal_loss_impl.1} parent=0 // pred_check
    _
  $region3: #{_focal_loss_impl.1} parent=0 // pred_check_branch
    %10 = sbr.rel (0) target = $region5
  $region4: #{_focal_loss_impl.1} parent=0 // pred_region
    _
  $region5: #{_focal_loss_impl.1} parent=0 // pred_fallthru
    _
  // Predicated region
  $region6: #{_focal_loss_impl.1} parent=0 // pred_check
    _
  $region7: #{_focal_loss_impl.1} parent=0 // pred_check_branch
    %12 = sbr.rel (0) target = $region9
  $region8: #{_focal_loss_impl.1} parent=0 // pred_region
    _
  $region9: #{_focal_loss_impl.1} parent=0 // pred_fallthru
    _
  %p13 = scmp.eq.s32.totalorder 0, 0
  // Predicated region
  $region10: #{_focal_loss_impl.1} parent=0 // pred_check
    %p14 = pneg %p13
  $region11: #{_focal_loss_impl.1} parent=0 // pred_check_branch
    %16 = sbr.rel (%p14) target = $region13
  $region12: #{_focal_loss_impl.1} parent=0 // pred_region
    %17 = vst [vmem:[%s2] sm:$0xff] 0.0
    %18 = vst [vmem:[%s3] sm:$0xff] 0.0
  $region13: #{_focal_loss_impl.1} parent=0 // pred_fallthru
    _
  %v19 = vlaneseq
  %v20 = vshrl.u32 %v19, 7
  %v21 = vadd.s32 %v20, 8
  %v22 = vadd.s32 %v20, 16
  %v23 = vadd.s32 %v20, 24
  %s24 = smul.u32 0, 32
  %v25 = vld [vmem:[%s0] sm:$0xff]
  %v26 = vld [vmem:[%s0 + $0x8] sm:$0xff]
  %v27 = vld [vmem:[%s0 + $0x10] sm:$0xff]
  %v28 = vld [vmem:[%s0 + $0x18] sm:$0xff]
  %v29 = vld [vmem:[%s1] sm:$0xff]
  %v30 = vld [vmem:[%s1 + $0x8] sm:$0xff]
  %v31 = vld [vmem:[%s1 + $0x10] sm:$0xff]
  %v32 = vld [vmem:[%s1 + $0x18] sm:$0xff]
  %s33 = ssub.s32 16, %s24
  %v34 = vstv %s33
  %vm35 = vcmp.lt.s32.totalorder %v20, %v34
  %vm36 = vcmp.lt.s32.totalorder %v21, %v34
  %vm37 = vcmp.lt.s32.totalorder %v22, %v34
  %vm38 = vcmp.lt.s32.totalorder %v23, %v34
  %vm39 = vcmp.ne.f32.partialorder %v29, -1.0
  %vm40 = vcmp.ne.f32.partialorder %v30, -1.0
  %vm41 = vcmp.ne.f32.partialorder %v31, -1.0
  %vm42 = vcmp.ne.f32.partialorder %v32, -1.0
  %vm43 = vmand %vm35, %vm39
  %vm44 = vmand %vm36, %vm40
  %vm45 = vmand %vm37, %vm41
  %vm46 = vmand %vm38, %vm42
  %v47 = vand.u32 2147483647, %v25
  %v48 = vand.u32 2147483647, %v26
  %v49 = vand.u32 2147483647, %v27
  %v50 = vand.u32 2147483647, %v28
  %v51 = vsub.f32 0.0, %v47
  %v52 = vsub.f32 0.0, %v48
  %v53 = vsub.f32 0.0, %v49
  %v54 = vsub.f32 0.0, %v50
  %v55 = vmul.f32 %v51, 1.442695
  %v56 = vpow.pop %v55
  %v57 = vmul.f32 %v52, 1.442695
  %v58 = vpow.pop %v57
  %v59 = vmul.f32 %v53, 1.442695
  %v60 = vpow.pop %v59
  %v61 = vmul.f32 %v54, 1.442695
  %v62 = vpow.pop %v61
  %v63 = vadd.f32 %v56, 1.0
  %v64 = vlog2.pop %v63
  %v65 = vmul.f32 %v64, 0.6931472
  %v66 = vmul.f32 -0.5, %v56
  %v67 = vadd.f32 %v66, 1.0
  %v68 = vmul.f32 %v67, %v56
  %v69 = vand.u32 2147483647, %v56
  %vm70 = vcmp.lt.f32.partialorder %v69, 0.0004427343
  %v71 = vsel %vm70, %v68, %v65
  %v72 = vadd.f32 %v58, 1.0
  %v73 = vlog2.pop %v72
  %v74 = vmul.f32 %v73, 0.6931472
  %v75 = vmul.f32 -0.5, %v58
  %v76 = vadd.f32 %v75, 1.0
  %v77 = vmul.f32 %v76, %v58
  %v78 = vand.u32 2147483647, %v58
  %vm79 = vcmp.lt.f32.partialorder %v78, 0.0004427343
  %v80 = vsel %vm79, %v77, %v74
  %v81 = vadd.f32 %v60, 1.0
  %v82 = vlog2.pop %v81
  %v83 = vmul.f32 %v82, 0.6931472
  %v84 = vmul.f32 -0.5, %v60
  %v85 = vadd.f32 %v84, 1.0
  %v86 = vmul.f32 %v85, %v60
  %v87 = vand.u32 2147483647, %v60
  %vm88 = vcmp.lt.f32.partialorder %v87, 0.0004427343
  %v89 = vsel %vm88, %v86, %v83
  %v90 = vadd.f32 %v62, 1.0
  %v91 = vlog2.pop %v90
  %v92 = vmul.f32 %v91, 0.6931472
  %v93 = vmul.f32 -0.5, %v62
  %v94 = vadd.f32 %v93, 1.0
  %v95 = vmul.f32 %v94, %v62
  %v96 = vand.u32 2147483647, %v62
  %vm97 = vcmp.lt.f32.partialorder %v96, 0.0004427343
  %v98 = vsel %vm97, %v95, %v92
  %v99 = vadd.f32 %v56, 1.0
  %v100 = vadd.f32 %v58, 1.0
  %v101 = vadd.f32 %v60, 1.0
  %v102 = vadd.f32 %v62, 1.0
  %v103 = vrcp.pop %v99
  %v104 = vrcp.pop %v100
  %v105 = vrcp.pop %v101
  %v106 = vrcp.pop %v102
  %vm107 = vcmp.ge.f32.partialorder %v25, 0.0
  %vm108 = vcmp.ge.f32.partialorder %v26, 0.0
  %vm109 = vcmp.ge.f32.partialorder %v27, 0.0
  %vm110 = vcmp.ge.f32.partialorder %v28, 0.0
  %v111 = vmul.f32 %v56, %v103
  %v112 = vmul.f32 %v58, %v104
  %v113 = vmul.f32 %v60, %v105
  %v114 = vmul.f32 %v62, %v106
  %v115 = vsel %vm107, %v103, %v111
  %v116 = vsel %vm108, %v104, %v112
  %v117 = vsel %vm109, %v105, %v113
  %v118 = vsel %vm110, %v106, %v114
  %v119 = vmin.f32 %v25, 0.0
  %v120 = vmin.f32 %v26, 0.0
  %v121 = vmin.f32 %v27, 0.0
  %v122 = vmin.f32 %v28, 0.0
  %v123 = vsub.f32 %v119, %v71
  %v124 = vsub.f32 %v120, %v80
  %v125 = vsub.f32 %v121, %v89
  %v126 = vsub.f32 %v122, %v98
  %v127 = vmax.f32 %v123, -100.0
  %v128 = vmax.f32 %v124, -100.0
  %v129 = vmax.f32 %v125, -100.0
  %v130 = vmax.f32 %v126, -100.0
  %v131 = vmax.f32 %v25, 0.0
  %v132 = vmax.f32 %v26, 0.0
  %v133 = vmax.f32 %v27, 0.0
  %v134 = vmax.f32 %v28, 0.0
  %v135 = vsub.f32 0.0, %v131
  %v136 = vsub.f32 0.0, %v132
  %v137 = vsub.f32 0.0, %v133
  %v138 = vsub.f32 0.0, %v134
  %v139 = vsub.f32 %v135, %v71
  %v140 = vsub.f32 %v136, %v80
  %v141 = vsub.f32 %v137, %v89
  %v142 = vsub.f32 %v138, %v98
  %v143 = vmax.f32 %v139, -100.0
  %v144 = vmax.f32 %v140, -100.0
  %v145 = vmax.f32 %v141, -100.0
  %v146 = vmax.f32 %v142, -100.0
  %vm147 = vcmp.gt.f32.partialorder %v29, 0.0
  %vm148 = vcmp.gt.f32.partialorder %v30, 0.0
  %vm149 = vcmp.gt.f32.partialorder %v31, 0.0
  %vm150 = vcmp.gt.f32.partialorder %v32, 0.0
  %v151 = vsub.f32 %v29, %v115
  %v152 = vsub.f32 %v30, %v116
  %v153 = vsub.f32 %v31, %v117
  %v154 = vsub.f32 %v32, %v118
  %v155 = vmul.f32 %v151, %v151
  %v156 = vmul.f32 %v152, %v152
  %v157 = vmul.f32 %v153, %v153
  %v158 = vmul.f32 %v154, %v154
  %v159 = vmul.f32 %v115, %v115
  %v160 = vmul.f32 %v116, %v116
  %v161 = vmul.f32 %v117, %v117
  %v162 = vmul.f32 %v118, %v118
  %v163 = vmul.f32 %v155, 0.25
  %v164 = vmul.f32 %v156, 0.25
  %v165 = vmul.f32 %v157, 0.25
  %v166 = vmul.f32 %v158, 0.25
  %v167 = vmul.f32 %v159, 0.75
  %v168 = vmul.f32 %v160, 0.75
  %v169 = vmul.f32 %v161, 0.75
  %v170 = vmul.f32 %v162, 0.75
  %v171 = vsel %vm147, %v163, %v167
  %v172 = vsel %vm148, %v164, %v168
  %v173 = vsel %vm149, %v165, %v169
  %v174 = vsel %vm150, %v166, %v170
  %v175 = vmul.f32 %v29, %v127
  %v176 = vmul.f32 %v30, %v128
  %v177 = vmul.f32 %v31, %v129
  %v178 = vmul.f32 %v32, %v130
  %v179 = vsub.f32 1.0, %v29
  %v180 = vsub.f32 1.0, %v30
  %v181 = vsub.f32 1.0, %v31
  %v182 = vsub.f32 1.0, %v32
  %v183 = vmul.f32 %v179, %v143
  %v184 = vmul.f32 %v180, %v144
  %v185 = vmul.f32 %v181, %v145
  %v186 = vmul.f32 %v182, %v146
  %v187 = vadd.f32 %v175, %v183
  %v188 = vadd.f32 %v176, %v184
  %v189 = vadd.f32 %v177, %v185
  %v190 = vadd.f32 %v178, %v186
  %v191 = vsub.f32 0.0, %v187
  %v192 = vsub.f32 0.0, %v188
  %v193 = vsub.f32 0.0, %v189
  %v194 = vsub.f32 0.0, %v190
  %v195 = vmul.f32 %v191, %v171
  %v196 = vmul.f32 %v192, %v172
  %v197 = vmul.f32 %v193, %v173
  %v198 = vmul.f32 %v194, %v174
  %v199 = vsel %vm43, %v195, 0.0
  %v200 = vsel %vm44, %v196, 0.0
  %v201 = vsel %vm45, %v197, 0.0
  %v202 = vsel %vm46, %v198, 0.0
  %vm203 = vmand %vm43, %vm147
  %vm204 = vmand %vm44, %vm148
  %vm205 = vmand %vm45, %vm149
  %vm206 = vmand %vm46, %vm150
  %v207 = vsel %vm203, 1.0, 0.0
  %v208 = vsel %vm204, 1.0, 0.0
  %v209 = vsel %vm205, 1.0, 0.0
  %v210 = vsel %vm206, 1.0, 0.0
  %v211 = vadd.f32 %v199, %v200
  %v212 = vadd.f32 %v211, %v201
  %v213 = vadd.f32 %v212, %v202
  %v214 = vadd.f32 %v213, 0.0
  %v215 = vadd.f32 %v207, %v208
  %v216 = vadd.f32 %v215, %v209
  %v217 = vadd.f32 %v216, %v210
  %v218 = vadd.f32 %v217, 0.0
  %v219 = vld [vmem:[%s2] sm:$0xff]
  %v220 = vadd.f32 %v219, %v214
  %221 = vst [vmem:[%s2] sm:$0xff] %v220
  %v222 = vld [vmem:[%s3] sm:$0xff]
  %v223 = vadd.f32 %v222, %v218
  %224 = vst [vmem:[%s3] sm:$0xff] %v223
  // Predicated region
  $region14: #{_focal_loss_impl.1} parent=0 // pred_check
    _
  $region15: #{_focal_loss_impl.1} parent=0 // pred_check_branch
    %226 = sbr.rel (0) target = $region17
  $region16: #{_focal_loss_impl.1} parent=0 // pred_region
    _
  $region17: #{_focal_loss_impl.1} parent=0 // pred_fallthru
    _
  // Predicated region
  $region18: #{_focal_loss_impl.1} parent=0 // pred_check
    _
  $region19: #{_focal_loss_impl.1} parent=0 // pred_check_branch
    %228 = sbr.rel (0) target = $region21
  $region20: #{_focal_loss_impl.1} parent=0 // pred_region
    _
  $region21: #{_focal_loss_impl.1} parent=0 // pred_fallthru
    _
  // Predicated region
  $region22: #{_focal_loss_impl.1} parent=0 // pred_check
    _
  $region23: #{_focal_loss_impl.1} parent=0 // pred_check_branch
    %230 = sbr.rel (0) target = $region25
  $region24: #{_focal_loss_impl.1} parent=0 // pred_region
    _
  $region25: #{_focal_loss_impl.1} parent=0 // pred_fallthru
    _
  // Predicated region
  $region26: #{_focal_loss_impl.1} parent=0 // pred_check
    _
  $region27: #{_focal_loss_impl.1} parent=0 // pred_check_branch
    %232 = sbr.rel (0) target = $region29
  $region28: #{_focal_loss_impl.1} parent=0 // pred_region
    _
  $region29: #{_focal_loss_impl.1} parent=0 // pred_fallthru
    _

</llo_original>
